<compile_context>
chip_gen: v7x
topology: tpu7x:2x2x1
jax: 0.10.0
libtpu: 0.0.40
codegen_flags: <defaults>
</compile_context>

<pallas_src>
import functools

import jax
import jax.numpy as jnp
from jax.experimental import pallas as pl
from jax.experimental.pallas import tpu as pltpu


def _round_up(x, m):
    return (x + m - 1) // m * m


def _combine_kernel(x_ref, w_enc_ref, b_enc_ref, w_dec_ref, b_dec_ref, o_ref,
                    acc_ref, *, tk, vocab, w_enc_resident, compute_dtype):
    k = pl.program_id(1)

    @pl.when(k == 0)
    def _init():
        acc_ref[...] = jnp.zeros_like(acc_ref)

    # Current K-slice of W_enc^T: a dynamic slice of the VMEM-resident slab
    # (fetched from HBM exactly once for the whole grid), or the streamed
    # (tk, E) tile when W_enc does not fit VMEM.
    if w_enc_resident:
        start = pl.multiple_of(k * tk, 128)
        w_slice = w_enc_ref[pl.ds(start, tk), :]
    else:
        w_slice = w_enc_ref[...]

    x_tile = x_ref[...]

    # Ragged vocab: out-of-range K lanes of BOTH operands must be masked
    # (partial blocks on a reduction axis are not zero-filled).
    if vocab % tk != 0:
        valid = vocab - k * tk
        col = jax.lax.broadcasted_iota(jnp.int32, (1, tk), 1)
        x_tile = jnp.where(col < valid, x_tile, 0)
        row = jax.lax.broadcasted_iota(jnp.int32, (tk, 1), 0)
        w_slice = jnp.where(row < valid, w_slice, 0)

    # Encode partial sum: bf16 MXU operands (cast in-kernel, hidden under the
    # DMA), f32 accumulation.
    acc_ref[...] += jnp.dot(x_tile.astype(compute_dtype),
                            w_slice.astype(compute_dtype),
                            preferred_element_type=jnp.float32)

    @pl.when(k == pl.num_programs(1) - 1)
    def _finalize():
        encoded = acc_ref[...] + b_enc_ref[...]                      # (tb, E) f32
        out = jnp.dot(encoded, w_dec_ref[...].astype(jnp.float32),
                      preferred_element_type=jnp.float32)
        out = out + b_dec_ref[...]
        o_ref[...] = out.astype(o_ref.dtype)


@functools.partial(
    jax.jit,
    static_argnames=("block_b", "block_k", "compute_dtype", "out_dtype"))
def combine_pretrained_embs(x, w_enc_t, b_enc, w_dec_t, b_dec, *,
                            block_b=512, block_k=1024,
                            compute_dtype=jnp.bfloat16,
                            out_dtype=jnp.float32):
    """Fused forward of CombinePreTrainedEmbs.

    x:        (B, vocab_size)                              -- any real dtype
    w_enc_t:  (vocab_size, embedding_dim)                  == torch encode.weight.T
    b_enc:    (embedding_dim,)
    w_dec_t:  (embedding_dim, number_models*embedding_dim) == torch decode.weight.T
    b_dec:    (number_models*embedding_dim,)
    returns:  (B, number_models*embedding_dim) in out_dtype
    """
    B, V = x.shape
    E = w_enc_t.shape[1]
    NE = w_dec_t.shape[1]

    # ---- tile sizes -------------------------------------------------------
    if B <= 16:
        tb = _round_up(B, 8)
    else:
        # >=2 batch tiles (v7x megacore) and a multiple of 16 (bf16 sublanes);
        # cdiv(B,2)-based choice also limits last-tile padding for ragged B.
        tb = max(16, min(block_b, _round_up(-(-B // 2), 16)))
    tk = min(_round_up(block_k, 128), _round_up(V, 128))

    # ---- generation-aware VMEM budget --------------------------------------
    try:
        vmem_cap = int(pltpu.get_tpu_info().vmem_capacity_bytes)
    except Exception:
        vmem_cap = 64 << 20                       # conservative (v7x-sized)
    budget = max(min(vmem_cap - (16 << 20), 100 << 20), 24 << 20)

    x_b = jnp.dtype(x.dtype).itemsize
    we_b = jnp.dtype(w_enc_t.dtype).itemsize
    wd_b = jnp.dtype(w_dec_t.dtype).itemsize
    o_b = jnp.dtype(out_dtype).itemsize

    def working_set(tb_, tk_, resident):
        nk = -(-V // tk_)
        w_enc_rows = nk * tk_ if resident else tk_
        return (2 * tb_ * tk_ * x_b              # x tile (double-buffered)
                + 2 * w_enc_rows * E * we_b      # W_enc^T (resident slab / K slice)
                + 2 * E * NE * wd_b              # W_dec^T (resident)
                + 2 * tb_ * NE * o_b             # output tile
                + tb_ * E * 4                    # f32 accumulator scratch
                + 2 * 8 * E * 4 + 2 * 8 * NE * 4)  # biases (sublane padded)

    # Shrink tiles only if even the streamed working set blows the budget.
    while tk > 128 and working_set(tb, tk, False) > budget:
        tk = max(128, (tk // 2) // 128 * 128)
    while tb > 16 and working_set(tb, tk, False) > budget:
        tb = max(16, _round_up(tb // 2, 16))

    # Keep W_enc^T fully VMEM-resident (single HBM read) when it fits.
    w_enc_resident = working_set(tb, tk, True) <= budget
    ws = working_set(tb, tk, w_enc_resident)
    vmem_limit = int(min(max(ws + (8 << 20), 32 << 20), vmem_cap - (8 << 20)))

    num_b = -(-B // tb)
    num_k = -(-V // tk)
    grid = (num_b, num_k)

    # Biases as (1, dim) rows in f32; everything else keeps its native dtype —
    # no wrapper-side cast / pad passes over x or the weights.
    b_enc2 = b_enc.reshape(1, E).astype(jnp.float32)
    b_dec2 = b_dec.reshape(1, NE).astype(jnp.float32)

    if w_enc_resident:
        w_enc_spec = pl.BlockSpec((num_k * tk, E), lambda i, k: (0, 0))
    else:
        w_enc_spec = pl.BlockSpec((tk, E), lambda i, k: (k, 0))

    kernel = functools.partial(_combine_kernel, tk=tk, vocab=V,
                               w_enc_resident=w_enc_resident,
                               compute_dtype=compute_dtype)

    out = pl.pallas_call(
        kernel,
        out_shape=jax.ShapeDtypeStruct((B, NE), out_dtype),
        grid_spec=pltpu.PrefetchScalarGridSpec(
            num_scalar_prefetch=0,
            grid=grid,
            in_specs=[
                pl.BlockSpec((tb, tk), lambda i, k: (i, k)),   # x tile
                w_enc_spec,                                    # W_enc^T
                pl.BlockSpec((1, E), lambda i, k: (0, 0)),     # b_enc
                pl.BlockSpec((E, NE), lambda i, k: (0, 0)),    # W_dec^T
                pl.BlockSpec((1, NE), lambda i, k: (0, 0)),    # b_dec
            ],
            out_specs=pl.BlockSpec((tb, NE), lambda i, k: (i, 0)),
            scratch_shapes=[pltpu.VMEM((tb, E), jnp.float32)],
        ),
        compiler_params=pltpu.CompilerParams(
            dimension_semantics=("parallel", "arbitrary"),
            vmem_limit_bytes=vmem_limit,
        ),
    )(x, w_enc_t, b_enc2, w_dec_t, b_dec2)
    return out


def _init_linear(key, in_features, out_features):
    """Deterministic init mimicking torch.nn.Linear defaults (uniform +/-1/sqrt(fan_in))."""
    kw, kb = jax.random.split(key)
    bound = 1.0 / jnp.sqrt(in_features)
    w = jax.random.uniform(
        kw, (out_features, in_features), jnp.float32, -bound, bound)  # (out, in)
    b = jax.random.uniform(kb, (out_features,), jnp.float32, -bound, bound)
    return w, b


if __name__ == "__main__":
    # Small shapes; batch and vocab deliberately non-aligned to exercise the
    # ragged-batch (partial output block) and ragged-vocab (in-kernel mask) paths.
    batch = 6
    vocab_size = 200
    embedding_dim = 128
    number_models = 2

    key = jax.random.PRNGKey(0)
    k_x, k_enc, k_dec = jax.random.split(key, 3)

    x = jax.random.normal(k_x, (batch, vocab_size), jnp.float32)
    w_enc, b_enc = _init_linear(k_enc, vocab_size, embedding_dim)
    w_dec, b_dec = _init_linear(k_dec, embedding_dim,
                                number_models * embedding_dim)

    w_enc_t = jnp.asarray(w_enc.T)   # stored transposed, as the kernel expects
    w_dec_t = jnp.asarray(w_dec.T)

    out = combine_pretrained_embs(x, w_enc_t, b_enc, w_dec_t, b_dec)
    out = jax.block_until_ready(out)

    # Reference (pure f32, same math as the PyTorch forward). bf16 MXU
    # operands on the encode matmul with f32 accumulation => relaxed tolerance.
    encoded_ref = x @ w_enc.T + b_enc
    out_ref = encoded_ref @ w_dec.T + b_dec
    assert out.shape == (batch, number_models * embedding_dim)
    max_err = float(jnp.max(jnp.abs(out - out_ref)))
    assert jnp.allclose(out, out_ref, atol=3e-2, rtol=3e-2), max_err

    print("KERNEL_OK")
</pallas_src>

<mosaic_0001>
module attributes {stable_mosaic.version = 11 : i64} {
  func.func @_combine_kernel(%arg0: i32, %arg1: i32, %arg2: memref<8x256xf32, #tpu.memory_space<vmem>>, %arg3: memref<256x128xf32, #tpu.memory_space<vmem>>, %arg4: memref<1x128xf32, #tpu.memory_space<vmem>>, %arg5: memref<128x256xf32, #tpu.memory_space<vmem>>, %arg6: memref<1x256xf32, #tpu.memory_space<vmem>>, %arg7: memref<8x256xf32, #tpu.memory_space<vmem>>, %arg8: memref<8x128xf32, #tpu.memory_space<vmem>>) attributes {dimension_semantics = [#tpu.dimension_semantics<parallel>, #tpu.dimension_semantics<arbitrary>], iteration_bounds = array<i64: 1, 1>, scalar_prefetch = 0 : i64, scratch_operands = 1 : i64, tpu.core_type = #tpu.core_type<tc>, window_params = [{transform_indices = @transform_0, window_bounds = array<i64: 8, 256>}, {transform_indices = @transform_1, window_bounds = array<i64: 256, 128>}, {pipeline_mode = #tpu.pipeline_mode<synchronous>, transform_indices = @transform_2, window_bounds = array<i64: 1, 128>}, {pipeline_mode = #tpu.pipeline_mode<synchronous>, transform_indices = @transform_3, window_bounds = array<i64: 128, 256>}, {pipeline_mode = #tpu.pipeline_mode<synchronous>, transform_indices = @transform_4, window_bounds = array<i64: 1, 256>}, {transform_indices = @transform_5, window_bounds = array<i64: 8, 256>}]} {
    %c0_i32 = arith.constant 0 : i32
    %0 = arith.cmpi eq, %arg1, %c0_i32 : i32
    %1 = arith.extui %0 : i1 to i32
    %c0_i32_0 = arith.constant 0 : i32
    %2 = arith.cmpi ne, %1, %c0_i32_0 : i32
    scf.if %2 {
      %cst_12 = arith.constant 0.000000e+00 : f32
      %35 = vector.broadcast %cst_12 : f32 to vector<8x128xf32>
      %c0_13 = arith.constant 0 : index
      %c0_14 = arith.constant 0 : index
      %36 = vector.load %arg8[%c0_13, %c0_14] : memref<8x128xf32, #tpu.memory_space<vmem>>, vector<8x128xf32>
      tpu.vector_store %arg8[%c0_13, %c0_14], %35 {strides = array<i32>} : memref<8x128xf32, #tpu.memory_space<vmem>>, vector<8x128xf32>,
    } else {
    }
    %c256_i32 = arith.constant 256 : i32
    %3 = arith.muli %arg1, %c256_i32 : i32
    %4 = tpu.assume_multiple %3, 128 : i32
    %5 = arith.index_cast %4 : i32 to index
    %c0 = arith.constant 0 : index
    %6 = vector.load %arg3[%5, %c0] : memref<256x128xf32, #tpu.memory_space<vmem>>, vector<256x128xf32>
    %c0_1 = arith.constant 0 : index
    %c0_2 = arith.constant 0 : index
    %7 = vector.load %arg2[%c0_1, %c0_2] : memref<8x256xf32, #tpu.memory_space<vmem>>, vector<8x256xf32>
    %c256_i32_3 = arith.constant 256 : i32
    %8 = arith.muli %arg1, %c256_i32_3 : i32
    %c200_i32 = arith.constant 200 : i32
    %9 = arith.subi %c200_i32, %8 : i32
    %10 = tpu.iota {dimensions = array<i32: 1>} : vector<1x256xi32>
    %11 = vector.broadcast %9 : i32 to vector<1x256xi32>
    %12 = arith.cmpi slt, %10, %11 : vector<1x256xi32>
    %c0_i32_4 = arith.constant 0 : i32
    %13 = arith.sitofp %c0_i32_4 : i32 to f32
    %14 = vector.shape_cast %12 : vector<1x256xi1> to vector<1x256xi1>
    %15 = vector.broadcast %14 : vector<1x256xi1> to vector<8x256xi1>
    %16 = vector.broadcast %13 : f32 to vector<8x256xf32>
    %17 = arith.select %15, %7, %16 : vector<8x256xi1>, vector<8x256xf32>
    %18 = tpu.iota {dimensions = array<i32: 0>} : vector<256x1xi32>
    %19 = vector.broadcast %9 : i32 to vector<256x1xi32>
    %20 = arith.cmpi slt, %18, %19 : vector<256x1xi32>
    %c0_i32_5 = arith.constant 0 : i32
    %21 = arith.sitofp %c0_i32_5 : i32 to f32
    %22 = vector.shape_cast %20 : vector<256x1xi1> to vector<256x1xi1>
    %23 = vector.broadcast %22 : vector<256x1xi1> to vector<256x128xi1>
    %24 = vector.broadcast %21 : f32 to vector<256x128xf32>
    %25 = arith.select %23, %6, %24 : vector<256x128xi1>, vector<256x128xf32>
    %c0_6 = arith.constant 0 : index
    %c0_7 = arith.constant 0 : index
    %26 = vector.load %arg8[%c0_6, %c0_7] : memref<8x128xf32, #tpu.memory_space<vmem>>, vector<8x128xf32>
    %27 = arith.truncf %17 : vector<8x256xf32> to vector<8x256xbf16>
    %28 = arith.truncf %25 : vector<256x128xf32> to vector<256x128xbf16>
    %cst = arith.constant dense<0.000000e+00> : vector<8x128xf32>
    %29 = tpu.matmul %27, %28, %cst {dimension_numbers = #tpu.dot_dimension_numbers<[1], [0], [0], [1], [0, 0, 1, 1], [], []>} : vector<8x256xbf16>, vector<256x128xbf16>, vector<8x128xf32> -> vector<8x128xf32>
    %30 = arith.addf %26, %29 : vector<8x128xf32>
    %c0_8 = arith.constant 0 : index
    %c0_9 = arith.constant 0 : index
    %31 = vector.load %arg8[%c0_8, %c0_9] : memref<8x128xf32, #tpu.memory_space<vmem>>, vector<8x128xf32>
    tpu.vector_store %arg8[%c0_8, %c0_9], %30 {strides = array<i32>} : memref<8x128xf32, #tpu.memory_space<vmem>>, vector<8x128xf32>,
    %c0_i32_10 = arith.constant 0 : i32
    %32 = arith.cmpi eq, %arg1, %c0_i32_10 : i32
    %33 = arith.extui %32 : i1 to i32
    %c0_i32_11 = arith.constant 0 : i32
    %34 = arith.cmpi ne, %33, %c0_i32_11 : i32
    scf.if %34 {
      %c0_12 = arith.constant 0 : index
      %c0_13 = arith.constant 0 : index
      %35 = vector.load %arg8[%c0_12, %c0_13] : memref<8x128xf32, #tpu.memory_space<vmem>>, vector<8x128xf32>
      %c0_14 = arith.constant 0 : index
      %c0_15 = arith.constant 0 : index
      %36 = vector.load %arg4[%c0_14, %c0_15] : memref<1x128xf32, #tpu.memory_space<vmem>>, vector<1x128xf32>
      %37 = vector.broadcast %36 : vector<1x128xf32> to vector<8x128xf32>
      %38 = arith.addf %35, %37 : vector<8x128xf32>
      %c0_16 = arith.constant 0 : index
      %c0_17 = arith.constant 0 : index
      %39 = vector.load %arg5[%c0_16, %c0_17] : memref<128x256xf32, #tpu.memory_space<vmem>>, vector<128x256xf32>
      %cst_18 = arith.constant dense<0.000000e+00> : vector<8x256xf32>
      %40 = tpu.matmul %38, %39, %cst_18 {dimension_numbers = #tpu.dot_dimension_numbers<[1], [0], [0], [1], [0, 0, 1, 1], [], []>} : vector<8x128xf32>, vector<128x256xf32>, vector<8x256xf32> -> vector<8x256xf32>
      %c0_19 = arith.constant 0 : index
      %c0_20 = arith.constant 0 : index
      %41 = vector.load %arg6[%c0_19, %c0_20] : memref<1x256xf32, #tpu.memory_space<vmem>>, vector<1x256xf32>
      %42 = vector.broadcast %41 : vector<1x256xf32> to vector<8x256xf32>
      %43 = arith.addf %40, %42 : vector<8x256xf32>
      %c0_21 = arith.constant 0 : index
      %c0_22 = arith.constant 0 : index
      %44 = vector.load %arg7[%c0_21, %c0_22] : memref<8x256xf32, #tpu.memory_space<vmem>>, vector<8x256xf32>
      tpu.vector_store %arg7[%c0_21, %c0_22], %43 {strides = array<i32>} : memref<8x256xf32, #tpu.memory_space<vmem>>, vector<8x256xf32>,
    } else {
    }
    return
  }
  func.func @transform_0(%arg0: i32, %arg1: i32) -> (i32, i32) {
    %c0_i32 = arith.constant 0 : i32
    return %arg0, %arg1 : i32, i32
  }
  func.func @transform_1(%arg0: i32, %arg1: i32) -> (i32, i32) {
    %c0_i32 = arith.constant 0 : i32
    %c0_i32_0 = arith.constant 0 : i32
    %c0_i32_1 = arith.constant 0 : i32
    return %c0_i32, %c0_i32_0 : i32, i32
  }
  func.func @transform_2(%arg0: i32, %arg1: i32) -> (i32, i32) {
    %c0_i32 = arith.constant 0 : i32
    %c0_i32_0 = arith.constant 0 : i32
    %c0_i32_1 = arith.constant 0 : i32
    return %c0_i32, %c0_i32_0 : i32, i32
  }
  func.func @transform_3(%arg0: i32, %arg1: i32) -> (i32, i32) {
    %c0_i32 = arith.constant 0 : i32
    %c0_i32_0 = arith.constant 0 : i32
    %c0_i32_1 = arith.constant 0 : i32
    return %c0_i32, %c0_i32_0 : i32, i32
  }
  func.func @transform_4(%arg0: i32, %arg1: i32) -> (i32, i32) {
    %c0_i32 = arith.constant 0 : i32
    %c0_i32_0 = arith.constant 0 : i32
    %c0_i32_1 = arith.constant 0 : i32
    return %c0_i32, %c0_i32_0 : i32, i32
  }
  func.func @transform_5(%arg0: i32, %arg1: i32) -> (i32, i32) {
    %c0_i32 = arith.constant 0 : i32
    %c0_i32_0 = arith.constant 0 : i32
    return %arg0, %c0_i32 : i32, i32
  }
}

</mosaic_0001>

<llo_original>
// kernel: combine_pretrained_embs.1
$region0: #{combine_pretrained_embs.1}
  #allocation0 [shape = 'u32[]', space=smem, size = 0x4, offset = 0x4, fixed_abs, tag = 'smem constant byte address 0x4 - core index']
  #allocation1 [shape = 'u32[144,128]{1,0:T(1,128)}', space=vmem, size = 0x12000, scoped, tag = 'internal scratch']
  #allocation2 [shape = 'f32[8,128]{1,0:T(8,128)}', space=vmem, size = 0x1000, scoped, tag = 'scratch operand']
  %s0 = inlined_call_operand.hbm [shape: f32[6,200], index: 0, kind: input, shape index: {}]
  %s1 = inlined_call_operand.hbm [shape: f32[200,128], index: 1, kind: input, shape index: {}]
  %s2 = inlined_call_operand.vmem [shape: f32[1,128], index: 2, kind: input, shape index: {}]
  %s3 = inlined_call_operand.hbm [shape: f32[128,256], index: 3, kind: input, shape index: {}]
  %s4 = inlined_call_operand.vmem [shape: f32[1,256], index: 4, kind: input, shape index: {}]
  %s5 = inlined_call_operand.hbm [shape: f32[6,256], index: 5, kind: output, shape index: {}]
  %s6 = sld [smem:[#allocation0]]
  $region50: #{combine_pretrained_embs.1} parent=0
    _
  %s8 = ssub.s32 1, %s6
  %s9 = scalar_select 0, %s8, %s6
  $region1: #{combine_pretrained_embs.1} parent=0
    #allocation3 [shape = 'u8[8192]{0}', space=vmem, size = 0x2000, scoped, tag = 'input window, operand 0, single buffered']
    #allocation4 [shape = 's32[1]{0}', space=sflag, size = 0x4, scoped, tag = 'scoped memory for combine_pretrained_embs.1']
    #allocation5 [shape = 's32[1]{0}', space=sflag, size = 0x4, scoped, tag = 'scoped memory for combine_pretrained_embs.1']
    #allocation6 [shape = 'u8[131072]{0}', space=vmem, size = 0x20000, scoped, tag = 'input window, operand 1, single buffered']
    #allocation7 [shape = 's32[1]{0}', space=sflag, size = 0x4, scoped, tag = 'scoped memory for combine_pretrained_embs.1']
    #allocation8 [shape = 'u8[131072]{0}', space=vmem, size = 0x20000, scoped, tag = 'input window, operand 3, single buffered']
    #allocation9 [shape = 'u8[8192]{0}', space=vmem, size = 0x2000, scoped, tag = 'output window, operand 0, single buffered']
    %10 = vsyncpa [#allocation4], 0
    %11 = vsyncpa [#allocation7], 0
    %12 = vsyncpa [#allocation5], 0
    // Predicated region
    $region2: #{combine_pretrained_embs.1} parent=1 // pred_check
      _
    $region3: #{combine_pretrained_embs.1} parent=1 // pred_check_branch
      %14 = sbr.rel (0) target = $region5
    $region4: #{combine_pretrained_embs.1} parent=1 // pred_region
      %s16 = ssub.s32 256, 256
      %17 = vsyncadd [#allocation4], %s16
      %s19 = sshll.u32 [#allocation3], 4
      %s20 = int_to_ptr.vmem [resolvable:$true] %s19
      %22 = dma.hbm_to_vmem [thread:$0]  %s0, 256, %s20, [#allocation4]
    $region5: #{combine_pretrained_embs.1} parent=1 // pred_fallthru
      _
    // Predicated region
    $region6: #{combine_pretrained_embs.1} parent=1 // pred_check
      _
    $region7: #{combine_pretrained_embs.1} parent=1 // pred_check_branch
      %24 = sbr.rel (0) target = $region9
    $region8: #{combine_pretrained_embs.1} parent=1 // pred_region
      %s26 = ssub.s32 4096, 3200
      %27 = vsyncadd [#allocation7], %s26
      %s28 = sshll.u32 [#allocation6], 4
      %s29 = int_to_ptr.vmem [resolvable:$true] %s28
      %34 = dma.hbm_to_vmem [thread:$0]  %s1, 3200, %s29, [#allocation7], 128, 128, 8
    $region9: #{combine_pretrained_embs.1} parent=1 // pred_fallthru
      _
    // Predicated region
    $region10: #{combine_pretrained_embs.1} parent=1 // pred_check
      _
    $region11: #{combine_pretrained_embs.1} parent=1 // pred_check_branch
      %36 = sbr.rel (0) target = $region13
    $region12: #{combine_pretrained_embs.1} parent=1 // pred_region
      _
    $region13: #{combine_pretrained_embs.1} parent=1 // pred_fallthru
      _
    // Predicated region
    $region14: #{combine_pretrained_embs.1} parent=1 // pred_check
      _
    $region15: #{combine_pretrained_embs.1} parent=1 // pred_check_branch
      %38 = sbr.rel (0) target = $region17
    $region16: #{combine_pretrained_embs.1} parent=1 // pred_region
      %s40 = ssub.s32 4096, 4096
      %41 = vsyncadd [#allocation7], %s40
      %s42 = sshll.u32 [#allocation8], 4
      %s43 = int_to_ptr.vmem [resolvable:$true] %s42
      %48 = dma.hbm_to_vmem [thread:$0]  %s3, 4096, %s43, [#allocation7], 256, 256, 16
    $region17: #{combine_pretrained_embs.1} parent=1 // pred_fallthru
      _
    // Predicated region
    $region18: #{combine_pretrained_embs.1} parent=1 // pred_check
      _
    $region19: #{combine_pretrained_embs.1} parent=1 // pred_check_branch
      %50 = sbr.rel (0) target = $region21
    $region20: #{combine_pretrained_embs.1} parent=1 // pred_region
      _
    $region21: #{combine_pretrained_embs.1} parent=1 // pred_fallthru
      _
    // Predicated region
    $region22: #{combine_pretrained_embs.1} parent=1 // pred_check
      _
    $region23: #{combine_pretrained_embs.1} parent=1 // pred_check_branch
      %52 = sbr.rel (0) target = $region25
    $region24: #{combine_pretrained_embs.1} parent=1 // pred_region
      %53 = dma.done [#allocation4], 256
    $region25: #{combine_pretrained_embs.1} parent=1 // pred_fallthru
      _
    // Predicated region
    $region26: #{combine_pretrained_embs.1} parent=1 // pred_check
      _
    $region27: #{combine_pretrained_embs.1} parent=1 // pred_check_branch
      %55 = sbr.rel (0) target = $region29
    $region28: #{combine_pretrained_embs.1} parent=1 // pred_region
      %56 = dma.done [#allocation7], 4096
    $region29: #{combine_pretrained_embs.1} parent=1 // pred_fallthru
      _
    // Predicated region
    $region30: #{combine_pretrained_embs.1} parent=1 // pred_check
      _
    $region31: #{combine_pretrained_embs.1} parent=1 // pred_check_branch
      %58 = sbr.rel (0) target = $region33
    $region32: #{combine_pretrained_embs.1} parent=1 // pred_region
      %59 = dma.done [#allocation7], 4096
    $region33: #{combine_pretrained_embs.1} parent=1 // pred_fallthru
      _
    %p61 = scmp.eq.s32.totalorder 0, 0
    // Predicated region
    $region34: #{combine_pretrained_embs.1} parent=1 // pred_check
      %p62 = pneg %p61
    $region35: #{combine_pretrained_embs.1} parent=1 // pred_check_branch
      %64 = sbr.rel (%p62) target = $region37
    $region36: #{combine_pretrained_embs.1} parent=1 // pred_region
      %65 = vst [vmem:[#allocation2] sm:$0xff] 0.0
    $region37: #{combine_pretrained_embs.1} parent=1 // pred_fallthru
      _
    %s66 = smul.u32 0, 256
    %s67 = scalar_lea.vmem [#allocation6], %s66
    %v68 = vld [vmem:[%s67] sm:$0xff]
    %v69 = vld [vmem:[%s67 + $0x8] sm:$0xff]
    %v70 = vld [vmem:[%s67 + $0x10] sm:$0xff]
    %v71 = vld [vmem:[%s67 + $0x18] sm:$0xff]
    %v72 = vld [vmem:[%s67 + $0x20] sm:$0xff]
    %v73 = vld [vmem:[%s67 + $0x28] sm:$0xff]
    %v74 = vld [vmem:[%s67 + $0x30] sm:$0xff]
    %v75 = vld [vmem:[%s67 + $0x38] sm:$0xff]
    %v76 = vld [vmem:[%s67 + $0x40] sm:$0xff]
    %v77 = vld [vmem:[%s67 + $0x48] sm:$0xff]
    %v78 = vld [vmem:[%s67 + $0x50] sm:$0xff]
    %v79 = vld [vmem:[%s67 + $0x58] sm:$0xff]
    %v80 = vld [vmem:[%s67 + $0x60] sm:$0xff]
    %v81 = vld [vmem:[%s67 + $0x68] sm:$0xff]
    %v82 = vld [vmem:[%s67 + $0x70] sm:$0xff]
    %v83 = vld [vmem:[%s67 + $0x78] sm:$0xff]
    %v84 = vld [vmem:[%s67 + $0x80] sm:$0xff]
    %v85 = vld [vmem:[%s67 + $0x88] sm:$0xff]
    %v86 = vld [vmem:[%s67 + $0x90] sm:$0xff]
    %v87 = vld [vmem:[%s67 + $0x98] sm:$0xff]
    %v88 = vld [vmem:[%s67 + $0xa0] sm:$0xff]
    %v89 = vld [vmem:[%s67 + $0xa8] sm:$0xff]
    %v90 = vld [vmem:[%s67 + $0xb0] sm:$0xff]
    %v91 = vld [vmem:[%s67 + $0xb8] sm:$0xff]
    %v92 = vld [vmem:[%s67 + $0xc0] sm:$0xff]
    %v93 = vld [vmem:[%s67 + $0xc8] sm:$0xff]
    %v94 = vld [vmem:[%s67 + $0xd0] sm:$0xff]
    %v95 = vld [vmem:[%s67 + $0xd8] sm:$0xff]
    %v96 = vld [vmem:[%s67 + $0xe0] sm:$0xff]
    %v97 = vld [vmem:[%s67 + $0xe8] sm:$0xff]
    %v98 = vld [vmem:[%s67 + $0xf0] sm:$0xff]
    %v99 = vld [vmem:[%s67 + $0xf8] sm:$0xff]
    %v100 = vld [vmem:[#allocation3] sm:$0xff]
    %v101 = vld [vmem:[#allocation3 + $0x8] sm:$0xff]
    %s102 = ssub.s32 200, %s66
    %v103 = vlaneseq
    %v104 = vand.u32 %v103, 127
    %v105 = vadd.s32 %v104, 128
    %v106 = vstv %s102
    %vm107 = vcmp.lt.s32.totalorder %v104, %v106
    %vm108 = vcmp.lt.s32.totalorder %v105, %v106
    %v109 = vsel %vm107, 1, 0
    %v110 = vsel %vm108, 1, 0
    %vm111 = vcmp.eq.s32.totalorder %v109, 1
    %vm112 = vcmp.eq.s32.totalorder %v110, 1
    %v113 = vsel %vm111, %v100, 0.0
    %v114 = vsel %vm112, %v101, 0.0
    %v115 = vlaneseq
    %v116 = vshrl.u32 %v115, 7
    %v117 = vadd.s32 %v116, 8
    %v118 = vadd.s32 %v116, 16
    %v119 = vadd.s32 %v116, 24
    %v120 = vadd.s32 %v116, 32
    %v121 = vadd.s32 %v116, 40
    %v122 = vadd.s32 %v116, 48
    %v123 = vadd.s32 %v116, 56
    %v124 = vadd.s32 %v116, 64
    %v125 = vadd.s32 %v116, 72
    %v126 = vadd.s32 %v116, 80
    %v127 = vadd.s32 %v116, 88
    %v128 = vadd.s32 %v116, 96
    %v129 = vadd.s32 %v116, 104
    %v130 = vadd.s32 %v116, 112
    %v131 = vadd.s32 %v116, 120
    %v132 = vadd.s32 %v116, 128
    %v133 = vadd.s32 %v116, 136
    %v134 = vadd.s32 %v116, 144
    %v135 = vadd.s32 %v116, 152
    %v136 = vadd.s32 %v116, 160
    %v137 = vadd.s32 %v116, 168
    %v138 = vadd.s32 %v116, 176
    %v139 = vadd.s32 %v116, 184
    %v140 = vadd.s32 %v116, 192
    %v141 = vadd.s32 %v116, 200
    %v142 = vadd.s32 %v116, 208
    %v143 = vadd.s32 %v116, 216
    %v144 = vadd.s32 %v116, 224
    %v145 = vadd.s32 %v116, 232
    %v146 = vadd.s32 %v116, 240
    %v147 = vadd.s32 %v116, 248
    %vm148 = vcmp.lt.s32.totalorder %v116, %v106
    %vm149 = vcmp.lt.s32.totalorder %v117, %v106
    %vm150 = vcmp.lt.s32.totalorder %v118, %v106
    %vm151 = vcmp.lt.s32.totalorder %v119, %v106
    %vm152 = vcmp.lt.s32.totalorder %v120, %v106
    %vm153 = vcmp.lt.s32.totalorder %v121, %v106
    %vm154 = vcmp.lt.s32.totalorder %v122, %v106
    %vm155 = vcmp.lt.s32.totalorder %v123, %v106
    %vm156 = vcmp.lt.s32.totalorder %v124, %v106
    %vm157 = vcmp.lt.s32.totalorder %v125, %v106
    %vm158 = vcmp.lt.s32.totalorder %v126, %v106
    %vm159 = vcmp.lt.s32.totalorder %v127, %v106
    %vm160 = vcmp.lt.s32.totalorder %v128, %v106
    %vm161 = vcmp.lt.s32.totalorder %v129, %v106
    %vm162 = vcmp.lt.s32.totalorder %v130, %v106
    %vm163 = vcmp.lt.s32.totalorder %v131, %v106
    %vm164 = vcmp.lt.s32.totalorder %v132, %v106
    %vm165 = vcmp.lt.s32.totalorder %v133, %v106
    %vm166 = vcmp.lt.s32.totalorder %v134, %v106
    %vm167 = vcmp.lt.s32.totalorder %v135, %v106
    %vm168 = vcmp.lt.s32.totalorder %v136, %v106
    %vm169 = vcmp.lt.s32.totalorder %v137, %v106
    %vm170 = vcmp.lt.s32.totalorder %v138, %v106
    %vm171 = vcmp.lt.s32.totalorder %v139, %v106
    %vm172 = vcmp.lt.s32.totalorder %v140, %v106
    %vm173 = vcmp.lt.s32.totalorder %v141, %v106
    %vm174 = vcmp.lt.s32.totalorder %v142, %v106
    %vm175 = vcmp.lt.s32.totalorder %v143, %v106
    %vm176 = vcmp.lt.s32.totalorder %v144, %v106
    %vm177 = vcmp.lt.s32.totalorder %v145, %v106
    %vm178 = vcmp.lt.s32.totalorder %v146, %v106
    %vm179 = vcmp.lt.s32.totalorder %v147, %v106
    %v180 = vsel %vm148, 1, 0
    %v181 = vsel %vm149, 1, 0
    %v182 = vsel %vm150, 1, 0
    %v183 = vsel %vm151, 1, 0
    %v184 = vsel %vm152, 1, 0
    %v185 = vsel %vm153, 1, 0
    %v186 = vsel %vm154, 1, 0
    %v187 = vsel %vm155, 1, 0
    %v188 = vsel %vm156, 1, 0
    %v189 = vsel %vm157, 1, 0
    %v190 = vsel %vm158, 1, 0
    %v191 = vsel %vm159, 1, 0
    %v192 = vsel %vm160, 1, 0
    %v193 = vsel %vm161, 1, 0
    %v194 = vsel %vm162, 1, 0
    %v195 = vsel %vm163, 1, 0
    %v196 = vsel %vm164, 1, 0
    %v197 = vsel %vm165, 1, 0
    %v198 = vsel %vm166, 1, 0
    %v199 = vsel %vm167, 1, 0
    %v200 = vsel %vm168, 1, 0
    %v201 = vsel %vm169, 1, 0
    %v202 = vsel %vm170, 1, 0
    %v203 = vsel %vm171, 1, 0
    %v204 = vsel %vm172, 1, 0
    %v205 = vsel %vm173, 1, 0
    %v206 = vsel %vm174, 1, 0
    %v207 = vsel %vm175, 1, 0
    %v208 = vsel %vm176, 1, 0
    %v209 = vsel %vm177, 1, 0
    %v210 = vsel %vm178, 1, 0
    %v211 = vsel %vm179, 1, 0
    %vm212 = vcmp.eq.s32.totalorder %v180, 1
    %vm213 = vcmp.eq.s32.totalorder %v181, 1
    %vm214 = vcmp.eq.s32.totalorder %v182, 1
    %vm215 = vcmp.eq.s32.totalorder %v183, 1
    %vm216 = vcmp.eq.s32.totalorder %v184, 1
    %vm217 = vcmp.eq.s32.totalorder %v185, 1
    %vm218 = vcmp.eq.s32.totalorder %v186, 1
    %vm219 = vcmp.eq.s32.totalorder %v187, 1
    %vm220 = vcmp.eq.s32.totalorder %v188, 1
    %vm221 = vcmp.eq.s32.totalorder %v189, 1
    %vm222 = vcmp.eq.s32.totalorder %v190, 1
    %vm223 = vcmp.eq.s32.totalorder %v191, 1
    %vm224 = vcmp.eq.s32.totalorder %v192, 1
    %vm225 = vcmp.eq.s32.totalorder %v193, 1
    %vm226 = vcmp.eq.s32.totalorder %v194, 1
    %vm227 = vcmp.eq.s32.totalorder %v195, 1
    %vm228 = vcmp.eq.s32.totalorder %v196, 1
    %vm229 = vcmp.eq.s32.totalorder %v197, 1
    %vm230 = vcmp.eq.s32.totalorder %v198, 1
    %vm231 = vcmp.eq.s32.totalorder %v199, 1
    %vm232 = vcmp.eq.s32.totalorder %v200, 1
    %vm233 = vcmp.eq.s32.totalorder %v201, 1
    %vm234 = vcmp.eq.s32.totalorder %v202, 1
    %vm235 = vcmp.eq.s32.totalorder %v203, 1
    %vm236 = vcmp.eq.s32.totalorder %v204, 1
    %vm237 = vcmp.eq.s32.totalorder %v205, 1
    %vm238 = vcmp.eq.s32.totalorder %v206, 1
    %vm239 = vcmp.eq.s32.totalorder %v207, 1
    %vm240 = vcmp.eq.s32.totalorder %v208, 1
    %vm241 = vcmp.eq.s32.totalorder %v209, 1
    %vm242 = vcmp.eq.s32.totalorder %v210, 1
    %vm243 = vcmp.eq.s32.totalorder %v211, 1
    %v244 = vsel %vm212, %v68, 0.0
    %v245 = vsel %vm213, %v69, 0.0
    %v246 = vsel %vm214, %v70, 0.0
    %v247 = vsel %vm215, %v71, 0.0
    %v248 = vsel %vm216, %v72, 0.0
    %v249 = vsel %vm217, %v73, 0.0
    %v250 = vsel %vm218, %v74, 0.0
    %v251 = vsel %vm219, %v75, 0.0
    %v252 = vsel %vm220, %v76, 0.0
    %v253 = vsel %vm221, %v77, 0.0
    %v254 = vsel %vm222, %v78, 0.0
    %v255 = vsel %vm223, %v79, 0.0
    %v256 = vsel %vm224, %v80, 0.0
    %v257 = vsel %vm225, %v81, 0.0
    %v258 = vsel %vm226, %v82, 0.0
    %v259 = vsel %vm227, %v83, 0.0
    %v260 = vsel %vm228, %v84, 0.0
    %v261 = vsel %vm229, %v85, 0.0
    %v262 = vsel %vm230, %v86, 0.0
    %v263 = vsel %vm231, %v87, 0.0
    %v264 = vsel %vm232, %v88, 0.0
    %v265 = vsel %vm233, %v89, 0.0
    %v266 = vsel %vm234, %v90, 0.0
    %v267 = vsel %vm235, %v91, 0.0
    %v268 = vsel %vm236, %v92, 0.0
    %v269 = vsel %vm237, %v93, 0.0
    %v270 = vsel %vm238, %v94, 0.0
    %v271 = vsel %vm239, %v95, 0.0
    %v272 = vsel %vm240, %v96, 0.0
    %v273 = vsel %vm241, %v97, 0.0
    %v274 = vsel %vm242, %v98, 0.0
    %v275 = vsel %vm243, %v99, 0.0
    %v276 = vld [vmem:[#allocation2] sm:$0xff]
    %v277 = vpack.c.bf16 %v113, %v113
    %v278 = vpack.c.bf16 %v114, %v114
    %v279 = vpack.c.bf16 %v245, %v244
    %v280 = vpack.c.bf16 %v247, %v246
    %v281 = vpack.c.bf16 %v249, %v248
    %v282 = vpack.c.bf16 %v251, %v250
    %v283 = vpack.c.bf16 %v253, %v252
    %v284 = vpack.c.bf16 %v255, %v254
    %v285 = vpack.c.bf16 %v257, %v256
    %v286 = vpack.c.bf16 %v259, %v258
    %v287 = vpack.c.bf16 %v261, %v260
    %v288 = vpack.c.bf16 %v263, %v262
    %v289 = vpack.c.bf16 %v265, %v264
    %v290 = vpack.c.bf16 %v267, %v266
    %v291 = vpack.c.bf16 %v269, %v268
    %v292 = vpack.c.bf16 %v271, %v270
    %v293 = vpack.c.bf16 %v273, %v272
    %v294 = vpack.c.bf16 %v275, %v274
    %295 = vmatprep.subr.bf16.mxu0 0
    %296 = vmatpush1.bf16.msra.mxu0 %v279
    %297 = vmatprep.subr.bf16.mxu0 0
    %298 = vmatpush1.bf16.msra.mxu0 %v280
    %299 = vmatprep.subr.bf16.mxu0 0
    %300 = vmatpush1.bf16.msra.mxu0 %v281
    %301 = vmatprep.subr.bf16.mxu0 0
    %302 = vmatpush1.bf16.msra.mxu0 %v282
    %303 = vmatprep.subr.bf16.mxu0 0
    %304 = vmatpush1.bf16.msra.mxu0 %v283
    %305 = vmatprep.subr.bf16.mxu0 0
    %306 = vmatpush1.bf16.msra.mxu0 %v284
    %307 = vmatprep.subr.bf16.mxu0 0
    %308 = vmatpush1.bf16.msra.mxu0 %v285
    %309 = vmatprep.subr.bf16.mxu0 0
    %310 = vmatpush1.bf16.msra.mxu0 %v286
    %311 = vmatprep.subr.bf16.mxu0 0
    %312 = vmatpush1.bf16.msra.mxu0 %v287
    %313 = vmatprep.subr.bf16.mxu0 0
    %314 = vmatpush1.bf16.msra.mxu0 %v288
    %315 = vmatprep.subr.bf16.mxu0 0
    %316 = vmatpush1.bf16.msra.mxu0 %v289
    %317 = vmatprep.subr.bf16.mxu0 0
    %318 = vmatpush1.bf16.msra.mxu0 %v290
    %319 = vmatprep.subr.bf16.mxu0 0
    %320 = vmatpush1.bf16.msra.mxu0 %v291
    %321 = vmatprep.subr.bf16.mxu0 0
    %322 = vmatpush1.bf16.msra.mxu0 %v292
    %323 = vmatprep.subr.bf16.mxu0 0
    %324 = vmatpush1.bf16.msra.mxu0 %v293
    %325 = vmatprep.subr.bf16.mxu0 0
    %326 = vmatpush1.bf16.msra.mxu0 %v294
    %327 = vmatprep.mubr.bf16.mxu0 %v278
    %328 = vmatmul.mubr.bf16.gmra.mrb[0].mxu0 %v277
    %v329 = vpop.f32.mrb[0].mxu0
    %v330 = vadd.f32 0.0, %v329
    %v331 = vpop.f32.mrb[0].mxu0
    %v332 = vpop.f32.mrb[0].mxu0
    %v333 = vpop.f32.mrb[0].mxu0
    %334 = vdwg.mxu0
    %v335 = vadd.f32 %v276, %v330
    %336 = vst [vmem:[#allocation2] sm:$0xff] %v335
    // Predicated region
    $region38: #{combine_pretrained_embs.1} parent=1 // pred_check
      %p337 = pneg %p61
    $region39: #{combine_pretrained_embs.1} parent=1 // pred_check_branch
      %339 = sbr.rel (%p337) target = $region41
    $region40: #{combine_pretrained_embs.1} parent=1 // pred_region
      %v340 = vld [vmem:[#allocation2] sm:$0xff]
      %v341 = vld [vmem:[%s2] sm:$0x1]
      %v343 = vlaneseq
      %v344 = vshrl.u32 %v343, 7
      %v345 = vsub.s32 0, %v344
      %v346 = vrot.slane %v341, %v345
      %v348 = vadd.f32 %v340, %v346
      %v349 = vld [vmem:[#allocation8] sm:$0xff]
      %v350 = vld [vmem:[#allocation8 + $0x8] sm:$0xff]
      %v351 = vld [vmem:[#allocation8 + $0x10] sm:$0xff]
      %v352 = vld [vmem:[#allocation8 + $0x18] sm:$0xff]
      %v353 = vld [vmem:[#allocation8 + $0x20] sm:$0xff]
      %v354 = vld [vmem:[#allocation8 + $0x28] sm:$0xff]
      %v355 = vld [vmem:[#allocation8 + $0x30] sm:$0xff]
      %v356 = vld [vmem:[#allocation8 + $0x38] sm:$0xff]
      %v357 = vld [vmem:[#allocation8 + $0x40] sm:$0xff]
      %v358 = vld [vmem:[#allocation8 + $0x48] sm:$0xff]
      %v359 = vld [vmem:[#allocation8 + $0x50] sm:$0xff]
      %v360 = vld [vmem:[#allocation8 + $0x58] sm:$0xff]
      %v361 = vld [vmem:[#allocation8 + $0x60] sm:$0xff]
      %v362 = vld [vmem:[#allocation8 + $0x68] sm:$0xff]
      %v363 = vld [vmem:[#allocation8 + $0x70] sm:$0xff]
      %v364 = vld [vmem:[#allocation8 + $0x78] sm:$0xff]
      %v365 = vld [vmem:[#allocation8 + $0x80] sm:$0xff]
      %v366 = vld [vmem:[#allocation8 + $0x88] sm:$0xff]
      %v367 = vld [vmem:[#allocation8 + $0x90] sm:$0xff]
      %v368 = vld [vmem:[#allocation8 + $0x98] sm:$0xff]
      %v369 = vld [vmem:[#allocation8 + $0xa0] sm:$0xff]
      %v370 = vld [vmem:[#allocation8 + $0xa8] sm:$0xff]
      %v371 = vld [vmem:[#allocation8 + $0xb0] sm:$0xff]
      %v372 = vld [vmem:[#allocation8 + $0xb8] sm:$0xff]
      %v373 = vld [vmem:[#allocation8 + $0xc0] sm:$0xff]
      %v374 = vld [vmem:[#allocation8 + $0xc8] sm:$0xff]
      %v375 = vld [vmem:[#allocation8 + $0xd0] sm:$0xff]
      %v376 = vld [vmem:[#allocation8 + $0xd8] sm:$0xff]
      %v377 = vld [vmem:[#allocation8 + $0xe0] sm:$0xff]
      %v378 = vld [vmem:[#allocation8 + $0xe8] sm:$0xff]
      %v379 = vld [vmem:[#allocation8 + $0xf0] sm:$0xff]
      %v380 = vld [vmem:[#allocation8 + $0xf8] sm:$0xff]
      %v381 = vld [vmem:[%s4] sm:$0x3]
      %v383 = vlaneseq
      %v384 = vshrl.u32 %v383, 7
      %v385 = vsub.s32 0, %v384
      %v386 = vrot.slane %v381, %v385
      %v387 = vlaneseq
      %v388 = vshrl.u32 %v387, 7
      %v389 = vsub.s32 1, %v388
      %v390 = vrot.slane %v381, %v389
      %393 = vmatprep.subr.mxu0 %v350
      %394 = vmatpush1.msra.mxu0 %v349
      %395 = vmatprep.subr.mxu0 %v352
      %396 = vmatpush1.msra.mxu0 %v351
      %397 = vmatprep.subr.mxu0 %v354
      %398 = vmatpush1.msra.mxu0 %v353
      %399 = vmatprep.subr.mxu0 %v356
      %400 = vmatpush1.msra.mxu0 %v355
      %401 = vmatprep.subr.mxu0 %v358
      %402 = vmatpush1.msra.mxu0 %v357
      %403 = vmatprep.subr.mxu0 %v360
      %404 = vmatpush1.msra.mxu0 %v359
      %405 = vmatprep.subr.mxu0 %v362
      %406 = vmatpush1.msra.mxu0 %v361
      %407 = vmatprep.subr.mxu0 %v364
      %408 = vmatpush1.msra.mxu0 %v363
      %409 = vmatprep.subr.mxu0 %v366
      %410 = vmatpush1.msra.mxu0 %v365
      %411 = vmatprep.subr.mxu0 %v368
      %412 = vmatpush1.msra.mxu0 %v367
      %413 = vmatprep.subr.mxu0 %v370
      %414 = vmatpush1.msra.mxu0 %v369
      %415 = vmatprep.subr.mxu0 %v372
      %416 = vmatpush1.msra.mxu0 %v371
      %417 = vmatprep.subr.mxu0 %v374
      %418 = vmatpush1.msra.mxu0 %v373
      %419 = vmatprep.subr.mxu0 %v376
      %420 = vmatpush1.msra.mxu0 %v375
      %421 = vmatprep.subr.mxu0 %v378
      %422 = vmatpush1.msra.mxu0 %v377
      %423 = vmatprep.subr.mxu0 %v380
      %424 = vmatpush1.msra.mxu0 %v379
      %425 = vmatprep.subr.mxu0 0.0
      %426 = vmatpush1.msra.mxu0 0.0
      %427 = vmatprep.subr.mxu0 0.0
      %428 = vmatpush1.msra.mxu0 0.0
      %429 = vmatprep.subr.mxu0 0.0
      %430 = vmatpush1.msra.mxu0 0.0
      %431 = vmatprep.subr.mxu0 0.0
      %432 = vmatpush1.msra.mxu0 0.0
      %433 = vmatprep.subr.mxu0 0.0
      %434 = vmatpush1.msra.mxu0 0.0
      %435 = vmatprep.subr.mxu0 0.0
      %436 = vmatpush1.msra.mxu0 0.0
      %437 = vmatprep.subr.mxu0 0.0
      %438 = vmatpush1.msra.mxu0 0.0
      %439 = vmatprep.subr.mxu0 0.0
      %440 = vmatpush1.msra.mxu0 0.0
      %441 = vmatprep.subr.mxu0 0.0
      %442 = vmatpush1.msra.mxu0 0.0
      %443 = vmatprep.subr.mxu0 0.0
      %444 = vmatpush1.msra.mxu0 0.0
      %445 = vmatprep.subr.mxu0 0.0
      %446 = vmatpush1.msra.mxu0 0.0
      %447 = vmatprep.subr.mxu0 0.0
      %448 = vmatpush1.msra.mxu0 0.0
      %449 = vmatprep.subr.mxu0 0.0
      %450 = vmatpush1.msra.mxu0 0.0
      %451 = vmatprep.subr.mxu0 0.0
      %452 = vmatpush1.msra.mxu0 0.0
      %453 = vmatprep.subr.mxu0 0.0
      %454 = vmatpush1.msra.mxu0 0.0
      %455 = vmatprep.subr.mxu0 0.0
      %456 = vmatpush1.msra.mxu0 0.0
      %457 = vmatprep.mubr.f32.mxu0 0.0
      %458 = vmatmul.mubr.f32.gmra.mrb[0].mxu0 %v348
      %v459 = vpop.f32.mrb[0].mxu0
      %v460 = vadd.f32 %v386, %v459
      %v461 = vpop.f32.mrb[0].mxu0
      %v462 = vadd.f32 %v390, %v461
      %463 = vdwg.mxu0
      %464 = vst [vmem:[#allocation9] sm:$0xff] %v460
      %465 = vst [vmem:[#allocation9 + $0x8] sm:$0xff] %v462
    $region41: #{combine_pretrained_embs.1} parent=1 // pred_fallthru
      _
    // Predicated region
    $region42: #{combine_pretrained_embs.1} parent=1 // pred_check
      _
    $region43: #{combine_pretrained_embs.1} parent=1 // pred_check_branch
      %467 = sbr.rel (0) target = $region45
    $region44: #{combine_pretrained_embs.1} parent=1 // pred_region
      %s469 = ssub.s32 256, 256
      %470 = vsyncadd [#allocation5], %s469
      %s472 = sshll.u32 [#allocation9], 4
      %s473 = int_to_ptr.vmem [resolvable:$true] %s472
      %475 = dma.vmem_to_hbm [thread:$0]  %s473, 256, %s5, [#allocation5]
    $region45: #{combine_pretrained_embs.1} parent=1 // pred_fallthru
      _
    // Predicated region
    $region46: #{combine_pretrained_embs.1} parent=1 // pred_check
      _
    $region47: #{combine_pretrained_embs.1} parent=1 // pred_check_branch
      %477 = sbr.rel (0) target = $region49
    $region48: #{combine_pretrained_embs.1} parent=1 // pred_region
      %478 = dma.done [#allocation5], 256
    $region49: #{combine_pretrained_embs.1} parent=1 // pred_fallthru
      _
    %479 = vsyncpa [#allocation4], 1
    %480 = vsyncpa [#allocation7], 1
    %481 = vsyncpa [#allocation5], 1

</llo_original>
